<compile_context>
chip_gen: v7x
topology: tpu7x:2x2x1
jax: 0.10.0
libtpu: 0.0.40
codegen_flags: <defaults>
</compile_context>

<pallas_src>
import functools

import jax
import jax.numpy as jnp
from jax.experimental import pallas as pl
from jax.experimental.pallas import tpu as pltpu


def _avg_reg_kernel(x_ref, w_ref, o_ref, acc_ref, *, power: int):
    """One feature-group tile of   out[b] = sum_p sum_f x[b,f]^(p+1) * w[p,f].

    x_ref   : VMEM (B, GT, 128)      -- tile of x (groups of 128 lanes)
    w_ref   : VMEM (power, GT, 128)  -- matching tile of the reshaped Linear weight
    o_ref   : VMEM (B, 1)            -- final result (written on the last grid step)
    acc_ref : VMEM (B, 128) scratch  -- per-lane partial sums, resident across steps
    """
    k = pl.program_id(0)

    @pl.when(k == 0)
    def _init():
        acc_ref[...] = jnp.zeros_like(acc_ref)

    x = x_ref[...]                          # (B, GT, 128) f32
    w = w_ref[...]                          # (power, GT, 128) f32

    # Elementwise power chain + weighting — pure VPU work at full sublane width.
    elem = x * w[0]
    xp = x
    for p in range(1, power):               # static unroll; `power` is compile-time
        xp = xp * x
        elem = elem + xp * w[p]

    # Reduce the group axis (mostly plain vreg adds); keep the 128 lanes.
    acc_ref[...] += jnp.sum(elem, axis=1)   # (B, 128)

    # Single cross-lane (XLU) reduction, once, on the last grid step only.
    @pl.when(k == pl.num_programs(0) - 1)
    def _finalize():
        o_ref[...] = jnp.sum(acc_ref[...], axis=-1, keepdims=True)


def _pick_group_tile(n_groups: int, batch: int, power: int,
                     vmem_budget_bytes: int = 8 << 20) -> int:
    """Largest group-tile whose double-buffered x+w footprint fits the budget.

    Budget is conservative (8 MiB) so the same choice is safe under v5e's
    16 MiB scoped-VMEM default as well as v6e/v7x.
    """
    def footprint(gt):
        # 2 pipeline buffers x (x tile + w tile), f32.
        return 2 * (batch + power) * gt * 128 * 4

    if footprint(n_groups) <= vmem_budget_bytes:
        return n_groups                      # single grid step, whole axis resident
    candidates = [gt for gt in range(8, n_groups + 1, 8)
                  if n_groups % gt == 0 and footprint(gt) <= vmem_budget_bytes]
    return max(candidates) if candidates else n_groups


def average_model_regression(x, weight, bias, *, power: int = 1):
    """Pallas equivalent of Average_Model_Regression.forward.

    x      : [B, F]            (F = 9216 in the original module)
    weight : [1, F * power]    (nn.Linear weight)
    bias   : [1]               (nn.Linear bias)
    returns: [B]
    """
    B, F = x.shape
    assert weight.shape == (1, F * power)
    assert F % 128 == 0, "feature dim must be lane-aligned (multiple of 128)"

    n_groups = F // 128
    gt = _pick_group_tile(n_groups, B, power)
    n_tiles = n_groups // gt

    # Free metadata reshapes: lane-pack the feature axis.
    x3 = x.reshape(B, n_groups, 128).astype(jnp.float32)
    # weight[0, p*F + f] multiplies x**(p+1)[b, f]  ->  (power, n_groups, 128).
    w3 = weight.reshape(power, n_groups, 128).astype(jnp.float32)

    out = pl.pallas_call(
        functools.partial(_avg_reg_kernel, power=power),
        out_shape=jax.ShapeDtypeStruct((B, 1), jnp.float32),
        grid_spec=pltpu.PrefetchScalarGridSpec(
            num_scalar_prefetch=0,
            grid=(n_tiles,),
            in_specs=[
                pl.BlockSpec((B, gt, 128), lambda k: (0, k, 0)),
                pl.BlockSpec((power, gt, 128), lambda k: (0, k, 0)),
            ],
            out_specs=pl.BlockSpec((B, 1), lambda k: (0, 0)),
            scratch_shapes=[pltpu.VMEM((B, 128), jnp.float32)],
        ),
        compiler_params=pltpu.CompilerParams(
            dimension_semantics=("arbitrary",),   # feature axis is a reduction
        ),
    )(x3, w3)

    # Bias added outside the kernel (one tiny XLA add), then torch.flatten.
    return (out + bias.astype(jnp.float32).reshape(1, 1)).reshape(B)


def _reference(x, weight, bias, power):
    feats = jnp.concatenate([x ** i for i in range(1, power + 1)], axis=1)
    return (feats @ weight.T + bias).reshape(-1)


if __name__ == "__main__":
    POWER = 2          # exercises the cat([x**1, x**2], dim=1) path
    B, F = 2, 9216     # feature size fixed by the module's Linear(9216*power, 1)

    key = jax.random.PRNGKey(0)
    kx, kw, kb = jax.random.split(key, 3)

    x = jax.random.normal(kx, (B, F), dtype=jnp.float32) * 0.5
    # Deterministic nn.Linear-style init: U(-1/sqrt(fan_in), 1/sqrt(fan_in))
    fan_in = F * POWER
    bound = 1.0 / jnp.sqrt(jnp.float32(fan_in))
    weight = jax.random.uniform(kw, (1, fan_in), jnp.float32, -bound, bound)
    bias = jax.random.uniform(kb, (1,), jnp.float32, -bound, bound)

    out = jax.jit(functools.partial(average_model_regression, power=POWER))(x, weight, bias)
    out = jax.block_until_ready(out)

    ref = _reference(x, weight, bias, POWER)
    assert out.shape == (B,)
    assert jnp.allclose(out, ref, atol=1e-3, rtol=1e-3), (out, ref)

    print("KERNEL_OK")
</pallas_src>

<mosaic_0001>
module attributes {stable_mosaic.version = 11 : i64} {
  func.func @_avg_reg_kernel(%arg0: i32, %arg1: memref<2x72x128xf32, #tpu.memory_space<vmem>>, %arg2: memref<2x72x128xf32, #tpu.memory_space<vmem>>, %arg3: memref<2x1xf32, #tpu.memory_space<vmem>>, %arg4: memref<2x128xf32, #tpu.memory_space<vmem>>) attributes {dimension_semantics = [#tpu.dimension_semantics<arbitrary>], iteration_bounds = array<i64: 1>, scalar_prefetch = 0 : i64, scratch_operands = 1 : i64, tpu.core_type = #tpu.core_type<tc>, window_params = [{transform_indices = @transform_0, window_bounds = array<i64: 2, 72, 128>}, {transform_indices = @transform_1, window_bounds = array<i64: 2, 72, 128>}, {pipeline_mode = #tpu.pipeline_mode<synchronous>, transform_indices = @transform_2, window_bounds = array<i64: 2, 1>}]} {
    %c0_i32 = arith.constant 0 : i32
    %0 = arith.cmpi eq, %arg0, %c0_i32 : i32
    %1 = arith.extui %0 : i1 to i32
    %c0_i32_0 = arith.constant 0 : i32
    %2 = arith.cmpi ne, %1, %c0_i32_0 : i32
    scf.if %2 {
      %cst_12 = arith.constant 0.000000e+00 : f32
      %24 = vector.broadcast %cst_12 : f32 to vector<2x128xf32>
      %c0_13 = arith.constant 0 : index
      %c0_14 = arith.constant 0 : index
      %25 = vector.load %arg4[%c0_13, %c0_14] : memref<2x128xf32, #tpu.memory_space<vmem>>, vector<2x128xf32>
      tpu.vector_store %arg4[%c0_13, %c0_14], %24 {strides = array<i32>} : memref<2x128xf32, #tpu.memory_space<vmem>>, vector<2x128xf32>,
    } else {
    }
    %c0 = arith.constant 0 : index
    %c0_1 = arith.constant 0 : index
    %c0_2 = arith.constant 0 : index
    %3 = vector.load %arg1[%c0, %c0_1, %c0_2] : memref<2x72x128xf32, #tpu.memory_space<vmem>>, vector<2x72x128xf32>
    %c0_3 = arith.constant 0 : index
    %c0_4 = arith.constant 0 : index
    %c0_5 = arith.constant 0 : index
    %4 = vector.load %arg2[%c0_3, %c0_4, %c0_5] : memref<2x72x128xf32, #tpu.memory_space<vmem>>, vector<2x72x128xf32>
    %5 = vector.extract_strided_slice %4 {offsets = [0, 0, 0], sizes = [1, 72, 128], strides = [1, 1, 1]} : vector<2x72x128xf32> to vector<1x72x128xf32>
    %6 = vector.shape_cast %5 : vector<1x72x128xf32> to vector<72x128xf32>
    %7 = vector.shape_cast %6 : vector<72x128xf32> to vector<1x72x128xf32>
    %8 = vector.broadcast %7 : vector<1x72x128xf32> to vector<2x72x128xf32>
    %9 = arith.mulf %3, %8 : vector<2x72x128xf32>
    %10 = arith.mulf %3, %3 : vector<2x72x128xf32>
    %11 = vector.extract_strided_slice %4 {offsets = [1, 0, 0], sizes = [1, 72, 128], strides = [1, 1, 1]} : vector<2x72x128xf32> to vector<1x72x128xf32>
    %12 = vector.shape_cast %11 : vector<1x72x128xf32> to vector<72x128xf32>
    %13 = vector.shape_cast %12 : vector<72x128xf32> to vector<1x72x128xf32>
    %14 = vector.broadcast %13 : vector<1x72x128xf32> to vector<2x72x128xf32>
    %15 = arith.mulf %10, %14 : vector<2x72x128xf32>
    %16 = arith.addf %9, %15 : vector<2x72x128xf32>
    %c0_6 = arith.constant 0 : index
    %c0_7 = arith.constant 0 : index
    %17 = vector.load %arg4[%c0_6, %c0_7] : memref<2x128xf32, #tpu.memory_space<vmem>>, vector<2x128xf32>
    %cst = arith.constant dense<0.000000e+00> : vector<2x128xf32>
    %18 = vector.multi_reduction <add>, %16, %cst [1] : vector<2x72x128xf32> to vector<2x128xf32>
    %19 = arith.addf %17, %18 : vector<2x128xf32>
    %c0_8 = arith.constant 0 : index
    %c0_9 = arith.constant 0 : index
    %20 = vector.load %arg4[%c0_8, %c0_9] : memref<2x128xf32, #tpu.memory_space<vmem>>, vector<2x128xf32>
    tpu.vector_store %arg4[%c0_8, %c0_9], %19 {strides = array<i32>} : memref<2x128xf32, #tpu.memory_space<vmem>>, vector<2x128xf32>,
    %c0_i32_10 = arith.constant 0 : i32
    %21 = arith.cmpi eq, %arg0, %c0_i32_10 : i32
    %22 = arith.extui %21 : i1 to i32
    %c0_i32_11 = arith.constant 0 : i32
    %23 = arith.cmpi ne, %22, %c0_i32_11 : i32
    scf.if %23 {
      %c0_12 = arith.constant 0 : index
      %c0_13 = arith.constant 0 : index
      %24 = vector.load %arg4[%c0_12, %c0_13] : memref<2x128xf32, #tpu.memory_space<vmem>>, vector<2x128xf32>
      %cst_14 = arith.constant dense<0.000000e+00> : vector<2xf32>
      %25 = vector.multi_reduction <add>, %24, %cst_14 [1] : vector<2x128xf32> to vector<2xf32>
      %26 = vector.shape_cast %25 : vector<2xf32> to vector<2x1xf32>
      %c0_15 = arith.constant 0 : index
      %c0_16 = arith.constant 0 : index
      %27 = vector.load %arg3[%c0_15, %c0_16] : memref<2x1xf32, #tpu.memory_space<vmem>>, vector<2x1xf32>
      tpu.vector_store %arg3[%c0_15, %c0_16], %26 {strides = array<i32>} : memref<2x1xf32, #tpu.memory_space<vmem>>, vector<2x1xf32>,
    } else {
    }
    return
  }
  func.func @transform_0(%arg0: i32) -> (i32, i32, i32) {
    %c0_i32 = arith.constant 0 : i32
    %c0_i32_0 = arith.constant 0 : i32
    %c0_i32_1 = arith.constant 0 : i32
    return %c0_i32, %arg0, %c0_i32_0 : i32, i32, i32
  }
  func.func @transform_1(%arg0: i32) -> (i32, i32, i32) {
    %c0_i32 = arith.constant 0 : i32
    %c0_i32_0 = arith.constant 0 : i32
    %c0_i32_1 = arith.constant 0 : i32
    return %c0_i32, %arg0, %c0_i32_0 : i32, i32, i32
  }
  func.func @transform_2(%arg0: i32) -> (i32, i32) {
    %c0_i32 = arith.constant 0 : i32
    %c0_i32_0 = arith.constant 0 : i32
    %c0_i32_1 = arith.constant 0 : i32
    return %c0_i32, %c0_i32_0 : i32, i32
  }
}

</mosaic_0001>

<llo_original>
// kernel: average_model_regression.1
$region0: #{average_model_regression.1}
  #allocation0 [shape = 'u32[]', space=smem, size = 0x4, offset = 0x4, fixed_abs, tag = 'smem constant byte address 0x4 - core index']
  #allocation1 [shape = 'u32[144,128]{1,0:T(1,128)}', space=vmem, size = 0x12000, scoped, tag = 'internal scratch']
  #allocation2 [shape = 'f32[2,128]{1,0:T(2,128)}', space=vmem, size = 0x400, scoped, tag = 'scratch operand']
  %s0 = inlined_call_operand.vmem [shape: f32[2,72,128], index: 0, kind: input, shape index: {}]
  %s1 = inlined_call_operand.vmem [shape: f32[2,72,128], index: 1, kind: input, shape index: {}]
  %s2 = inlined_call_operand.vmem [shape: f32[2,1], index: 2, kind: output, shape index: {}]
  %s3 = sld [smem:[#allocation0]]
  $region26: #{average_model_regression.1} parent=0
    _
  %s5 = ssub.s32 1, %s3
  %s6 = scalar_select 0, %s5, %s3
  // Predicated region
  $region2: #{average_model_regression.1} parent=0 // pred_check
    _
  $region3: #{average_model_regression.1} parent=0 // pred_check_branch
    %8 = sbr.rel (0) target = $region5
  $region4: #{average_model_regression.1} parent=0 // pred_region
    _
  $region5: #{average_model_regression.1} parent=0 // pred_fallthru
    _
  // Predicated region
  $region6: #{average_model_regression.1} parent=0 // pred_check
    _
  $region7: #{average_model_regression.1} parent=0 // pred_check_branch
    %10 = sbr.rel (0) target = $region9
  $region8: #{average_model_regression.1} parent=0 // pred_region
    _
  $region9: #{average_model_regression.1} parent=0 // pred_fallthru
    _
  %p11 = scmp.eq.s32.totalorder 0, 0
  // Predicated region
  $region10: #{average_model_regression.1} parent=0 // pred_check
    %p12 = pneg %p11
  $region11: #{average_model_regression.1} parent=0 // pred_check_branch
    %14 = sbr.rel (%p12) target = $region13
  $region12: #{average_model_regression.1} parent=0 // pred_region
    %15 = vst [vmem:[#allocation2] sm:$0x3] 0.0
  $region13: #{average_model_regression.1} parent=0 // pred_fallthru
    _
  %v16 = vld [vmem:[%s0] sm:$0xff]
  %v17 = vld [vmem:[%s0 + $0x8] sm:$0xff]
  %v18 = vld [vmem:[%s0 + $0x10] sm:$0xff]
  %v19 = vld [vmem:[%s0 + $0x18] sm:$0xff]
  %v20 = vld [vmem:[%s0 + $0x20] sm:$0xff]
  %v21 = vld [vmem:[%s0 + $0x28] sm:$0xff]
  %v22 = vld [vmem:[%s0 + $0x30] sm:$0xff]
  %v23 = vld [vmem:[%s0 + $0x38] sm:$0xff]
  %v24 = vld [vmem:[%s0 + $0x40] sm:$0xff]
  %v25 = vld [vmem:[%s0 + $0x48] sm:$0xff]
  %v26 = vld [vmem:[%s0 + $0x50] sm:$0xff]
  %v27 = vld [vmem:[%s0 + $0x58] sm:$0xff]
  %v28 = vld [vmem:[%s0 + $0x60] sm:$0xff]
  %v29 = vld [vmem:[%s0 + $0x68] sm:$0xff]
  %v30 = vld [vmem:[%s0 + $0x70] sm:$0xff]
  %v31 = vld [vmem:[%s0 + $0x78] sm:$0xff]
  %v32 = vld [vmem:[%s0 + $0x80] sm:$0xff]
  %v33 = vld [vmem:[%s0 + $0x88] sm:$0xff]
  %v34 = vld [vmem:[%s1] sm:$0xff]
  %v35 = vld [vmem:[%s1 + $0x8] sm:$0xff]
  %v36 = vld [vmem:[%s1 + $0x10] sm:$0xff]
  %v37 = vld [vmem:[%s1 + $0x18] sm:$0xff]
  %v38 = vld [vmem:[%s1 + $0x20] sm:$0xff]
  %v39 = vld [vmem:[%s1 + $0x28] sm:$0xff]
  %v40 = vld [vmem:[%s1 + $0x30] sm:$0xff]
  %v41 = vld [vmem:[%s1 + $0x38] sm:$0xff]
  %v42 = vld [vmem:[%s1 + $0x40] sm:$0xff]
  %v43 = vld [vmem:[%s1 + $0x48] sm:$0xff]
  %v44 = vld [vmem:[%s1 + $0x50] sm:$0xff]
  %v45 = vld [vmem:[%s1 + $0x58] sm:$0xff]
  %v46 = vld [vmem:[%s1 + $0x60] sm:$0xff]
  %v47 = vld [vmem:[%s1 + $0x68] sm:$0xff]
  %v48 = vld [vmem:[%s1 + $0x70] sm:$0xff]
  %v49 = vld [vmem:[%s1 + $0x78] sm:$0xff]
  %v50 = vld [vmem:[%s1 + $0x80] sm:$0xff]
  %v51 = vld [vmem:[%s1 + $0x88] sm:$0xff]
  %v52 = vmul.f32 %v16, %v34
  %v53 = vmul.f32 %v17, %v35
  %v54 = vmul.f32 %v18, %v36
  %v55 = vmul.f32 %v19, %v37
  %v56 = vmul.f32 %v20, %v38
  %v57 = vmul.f32 %v21, %v39
  %v58 = vmul.f32 %v22, %v40
  %v59 = vmul.f32 %v23, %v41
  %v60 = vmul.f32 %v24, %v42
  %v61 = vmul.f32 %v25, %v34
  %v62 = vmul.f32 %v26, %v35
  %v63 = vmul.f32 %v27, %v36
  %v64 = vmul.f32 %v28, %v37
  %v65 = vmul.f32 %v29, %v38
  %v66 = vmul.f32 %v30, %v39
  %v67 = vmul.f32 %v31, %v40
  %v68 = vmul.f32 %v32, %v41
  %v69 = vmul.f32 %v33, %v42
  %v70 = vmul.f32 %v16, %v16
  %v71 = vmul.f32 %v17, %v17
  %v72 = vmul.f32 %v18, %v18
  %v73 = vmul.f32 %v19, %v19
  %v74 = vmul.f32 %v20, %v20
  %v75 = vmul.f32 %v21, %v21
  %v76 = vmul.f32 %v22, %v22
  %v77 = vmul.f32 %v23, %v23
  %v78 = vmul.f32 %v24, %v24
  %v79 = vmul.f32 %v25, %v25
  %v80 = vmul.f32 %v26, %v26
  %v81 = vmul.f32 %v27, %v27
  %v82 = vmul.f32 %v28, %v28
  %v83 = vmul.f32 %v29, %v29
  %v84 = vmul.f32 %v30, %v30
  %v85 = vmul.f32 %v31, %v31
  %v86 = vmul.f32 %v32, %v32
  %v87 = vmul.f32 %v33, %v33
  %v88 = vmul.f32 %v70, %v43
  %v89 = vmul.f32 %v71, %v44
  %v90 = vmul.f32 %v72, %v45
  %v91 = vmul.f32 %v73, %v46
  %v92 = vmul.f32 %v74, %v47
  %v93 = vmul.f32 %v75, %v48
  %v94 = vmul.f32 %v76, %v49
  %v95 = vmul.f32 %v77, %v50
  %v96 = vmul.f32 %v78, %v51
  %v97 = vmul.f32 %v79, %v43
  %v98 = vmul.f32 %v80, %v44
  %v99 = vmul.f32 %v81, %v45
  %v100 = vmul.f32 %v82, %v46
  %v101 = vmul.f32 %v83, %v47
  %v102 = vmul.f32 %v84, %v48
  %v103 = vmul.f32 %v85, %v49
  %v104 = vmul.f32 %v86, %v50
  %v105 = vmul.f32 %v87, %v51
  %v106 = vadd.f32 %v52, %v88
  %v107 = vadd.f32 %v53, %v89
  %v108 = vadd.f32 %v54, %v90
  %v109 = vadd.f32 %v55, %v91
  %v110 = vadd.f32 %v56, %v92
  %v111 = vadd.f32 %v57, %v93
  %v112 = vadd.f32 %v58, %v94
  %v113 = vadd.f32 %v59, %v95
  %v114 = vadd.f32 %v60, %v96
  %v115 = vadd.f32 %v61, %v97
  %v116 = vadd.f32 %v62, %v98
  %v117 = vadd.f32 %v63, %v99
  %v118 = vadd.f32 %v64, %v100
  %v119 = vadd.f32 %v65, %v101
  %v120 = vadd.f32 %v66, %v102
  %v121 = vadd.f32 %v67, %v103
  %v122 = vadd.f32 %v68, %v104
  %v123 = vadd.f32 %v69, %v105
  %v124 = vld [vmem:[#allocation2] sm:$0x3]
  %v125 = vadd.f32 %v106, %v107
  %v126 = vadd.f32 %v125, %v108
  %v127 = vadd.f32 %v126, %v109
  %v128 = vadd.f32 %v127, %v110
  %v129 = vadd.f32 %v128, %v111
  %v130 = vadd.f32 %v129, %v112
  %v131 = vadd.f32 %v130, %v113
  %v132 = vadd.f32 %v131, %v114
  %v133 = vrot.slane %v132, 4
  %v134 = vadd.f32 %v132, %v133
  %v135 = vrot.slane %v134, 2
  %v136 = vadd.f32 %v134, %v135
  %v137 = vrot.slane %v136, 1
  %v138 = vadd.f32 %v136, %v137
  %v139 = vadd.f32 %v115, %v116
  %v140 = vadd.f32 %v139, %v117
  %v141 = vadd.f32 %v140, %v118
  %v142 = vadd.f32 %v141, %v119
  %v143 = vadd.f32 %v142, %v120
  %v144 = vadd.f32 %v143, %v121
  %v145 = vadd.f32 %v144, %v122
  %v146 = vadd.f32 %v145, %v123
  %v147 = vrot.slane %v146, 4
  %v148 = vadd.f32 %v146, %v147
  %v149 = vrot.slane %v148, 2
  %v150 = vadd.f32 %v148, %v149
  %v151 = vrot.slane %v150, 1
  %v152 = vadd.f32 %v150, %v151
  %vm155 = vcmask 1041409
  %v156 = vsel %vm155, %v152, %v138
  %v158 = vadd.f32 %v124, %v156
  %159 = vst [vmem:[#allocation2] sm:$0x3] %v158
  // Predicated region
  $region14: #{average_model_regression.1} parent=0 // pred_check
    %p160 = pneg %p11
  $region15: #{average_model_regression.1} parent=0 // pred_check_branch
    %162 = sbr.rel (%p160) target = $region17
  $region16: #{average_model_regression.1} parent=0 // pred_region
    %v163 = vld [vmem:[#allocation2] sm:$0x3]
    %vm164 = vcmask 1041408
    %v165 = vsel %vm164, %v163, 0.0
    %166 = vadd.xlane.f32.xlu0 %v165
    %v167 = vpop.xlane.xlu0 %166
    %vm168 = vcmask 1024
    %169 = vst.msk [vmem:[%s2] sm:$0x3] %vm168, %v167
  $region17: #{average_model_regression.1} parent=0 // pred_fallthru
    _
  // Predicated region
  $region18: #{average_model_regression.1} parent=0 // pred_check
    _
  $region19: #{average_model_regression.1} parent=0 // pred_check_branch
    %171 = sbr.rel (0) target = $region21
  $region20: #{average_model_regression.1} parent=0 // pred_region
    _
  $region21: #{average_model_regression.1} parent=0 // pred_fallthru
    _
  // Predicated region
  $region22: #{average_model_regression.1} parent=0 // pred_check
    _
  $region23: #{average_model_regression.1} parent=0 // pred_check_branch
    %173 = sbr.rel (0) target = $region25
  $region24: #{average_model_regression.1} parent=0 // pred_region
    _
  $region25: #{average_model_regression.1} parent=0 // pred_fallthru
    _

</llo_original>
